<compile_context>
chip_gen: v5e
topology: v5e:2x2
jax: 0.10.0
libtpu: 0.0.40
codegen_flags: <defaults>
</compile_context>

<pallas_src>
import functools

import jax
import jax.numpy as jnp
from jax.experimental import pallas as pl
from jax.experimental.pallas import tpu as pltpu


def _pick_nb(B, T, row_budget=1024):
    """Largest batch block NB dividing B with NB*T rows <= row_budget.

    Only picks NB > 1 when T is a multiple of 8 so every block keeps the
    (8, 128) sublane rule; the row budget keeps the matmul M in the MXU sweet
    spot and leaves enough grid steps to pipeline (and to feed both v7x cores).
    """
    if T % 8 != 0:
        return 1
    best = 1
    for cand in range(2, B + 1):
        if B % cand == 0 and cand * T <= row_budget:
            best = cand
    return best


def _res2net_kernel(x_ref, w_ref, b_ref, s_ref, t_ref, o_ref, pad_ref,
                    cols_ref, *, scale, ksize, nb, tlen):
    """One grid step = NB batch elements, all (scale-1) convolved chunks.

    x_ref   : [scale-1, NB*T, Cc]   bf16 input chunks 1..scale-1 (chunk-major)
    w_ref   : [scale-1, K*Cc, Cc]   bf16 tap-fused (im2col) conv weights
    b_ref   : [scale-1, 1, Cc]      f32 conv bias
    s_ref   : [scale-1, 1, Cc]      f32 folded BN scale (gamma*rsqrt(var+eps))
    t_ref   : [scale-1, 1, Cc]      f32 folded BN shift (beta - mean*scale)
    o_ref   : [scale-1, NB*T, Cc]   bf16 output chunks 1..scale-1
    pad_ref : [NB, T+2P, Cc]        f32 scratch, time-padded chunk
    cols_ref: [NB*T, K*Cc]          bf16 scratch, im2col matrix
    """
    K, T = ksize, tlen
    P = (K - 1) // 2                     # stride=1, dil=1 -> floor((K-1)/2)
    Cc = x_ref.shape[-1]

    # Only the P border rows of each padded chunk must stay zero; the interior
    # is fully rewritten for every chunk.  Re-zeroed every grid step so it is
    # correct under megacore sharding of the batch grid axis.
    if P > 0:
        z = jnp.zeros((nb, P, Cc), jnp.float32)
        pad_ref[:, 0:P, :] = z
        pad_ref[:, T + P:T + 2 * P, :] = z

    y_prev = None
    for i in range(scale - 1):           # static unroll; scale is small
        xi = x_ref[i]                    # [NB*T, Cc] bf16
        inp = xi.astype(jnp.float32)
        if i > 0:
            inp = inp + y_prev           # residual chain stays in f32

        # Time zero-padding via the border-zeroed scratch, then scatter the K
        # shifted taps straight into the persistent bf16 im2col scratch
        # (no f32 (T, K*Cc) concat temporary, no per-chunk vreg blow-up).
        for bb in range(nb):
            pad_ref[bb, P:P + T, :] = inp[bb * T:(bb + 1) * T, :]
        for bb in range(nb):
            for k in range(K):
                cols_ref[bb * T:(bb + 1) * T, k * Cc:(k + 1) * Cc] = (
                    pad_ref[bb, k:k + T, :].astype(jnp.bfloat16))

        # One tap-fused MXU contraction per chunk: (NB*T, K*Cc) @ (K*Cc, Cc).
        acc = jnp.dot(cols_ref[...], w_ref[i],
                      preferred_element_type=jnp.float32)      # f32 [NB*T, Cc]

        acc = jnp.maximum(acc + b_ref[i], 0.0)                 # bias + ReLU
        acc = acc * s_ref[i] + t_ref[i]                        # folded BN

        y_prev = acc                                           # f32 chain
        o_ref[i] = acc.astype(o_ref.dtype)                     # bf16 writeback


def res2net_block(x_bct, W, b, gamma, beta, mean, var, *, scale, ksize,
                  eps=1e-5, nb=None):
    """x_bct: [B, C, T] (torch layout). Returns [B, C, T] float32."""
    B, C, T = x_bct.shape
    assert C % scale == 0
    assert ksize % 2 == 1, "even kernel sizes use an asymmetric padding scheme"
    Cc = C // scale
    ns = scale - 1
    P = (ksize - 1) // 2

    # Chunk 0 is an exact identity: keep it in f32 and bypass the kernel.
    y0 = x_bct[:, :Cc, :]
    if ns == 0:
        return y0

    if nb is None:
        nb = _pick_nb(B, T)
    assert B % nb == 0

    # Chunks 1..scale-1: [B, C-Cc, T] -> [scale-1, B*T, Cc]; chunk index leads,
    # channels on lanes, batch*time merged so the kernel never reshapes.
    x_rest = x_bct[:, Cc:, :].reshape(B, ns, Cc, T)
    x_s = (jnp.transpose(x_rest, (1, 0, 3, 2))
           .reshape(ns, B * T, Cc).astype(jnp.bfloat16))

    # Tap-fused (im2col) weight layout: [scale-1, K*Cc, Cc], bf16.
    W2 = W.reshape(ns, ksize * Cc, Cc).astype(jnp.bfloat16)

    # Fold inference BatchNorm into per-channel scale/shift (f32).
    s = (gamma / jnp.sqrt(var + eps)).astype(jnp.float32)
    t = (beta - mean * s).astype(jnp.float32)
    bias = b.astype(jnp.float32)

    # VMEM budget: double-buffered in/out blocks + params + scratch, with
    # margin, floored at the default scoped limit and capped at 48 MiB so the
    # same tiling stays inside v7x's 64 MiB physical VMEM.
    blk_io = ns * nb * T * Cc * 2 * 2                       # bf16 in + out
    params = ns * ksize * Cc * Cc * 2 + 3 * ns * Cc * 4
    scratch = nb * (T + 2 * P) * Cc * 4 + nb * T * ksize * Cc * 2
    need = 2 * (blk_io + params) + scratch
    vmem_limit = int(min(max(2 * need, 16 * 2**20), 48 * 2**20))

    kern = functools.partial(_res2net_kernel, scale=scale, ksize=ksize,
                             nb=nb, tlen=T)
    out_s = pl.pallas_call(
        kern,
        out_shape=jax.ShapeDtypeStruct((ns, B * T, Cc), jnp.bfloat16),
        grid_spec=pltpu.PrefetchScalarGridSpec(
            num_scalar_prefetch=0,
            grid=(B // nb,),
            in_specs=[
                pl.BlockSpec((ns, nb * T, Cc), lambda bi: (0, bi, 0)),
                pl.BlockSpec((ns, ksize * Cc, Cc), lambda bi: (0, 0, 0)),
                pl.BlockSpec((ns, 1, Cc), lambda bi: (0, 0, 0)),
                pl.BlockSpec((ns, 1, Cc), lambda bi: (0, 0, 0)),
                pl.BlockSpec((ns, 1, Cc), lambda bi: (0, 0, 0)),
            ],
            out_specs=pl.BlockSpec((ns, nb * T, Cc), lambda bi: (0, bi, 0)),
            scratch_shapes=[
                pltpu.VMEM((nb, T + 2 * P, Cc), jnp.float32),
                pltpu.VMEM((nb * T, ksize * Cc), jnp.bfloat16),
            ],
        ),
        compiler_params=pltpu.CompilerParams(
            dimension_semantics=("parallel",),
            vmem_limit_bytes=vmem_limit),
    )(x_s, W2, bias, s, t)

    # [scale-1, B*T, Cc] bf16 -> [B, (scale-1)*Cc, T]; transpose while still
    # bf16 (half the layout-plumbing bytes), cast to f32 last.
    y_rest = jnp.transpose(out_s.reshape(ns, B, T, Cc), (1, 0, 3, 2))
    y_rest = y_rest.reshape(B, ns * Cc, T).astype(jnp.float32)
    return jnp.concatenate([y0, y_rest], axis=1)


def res2net_reference(x_bct, W, b, gamma, beta, mean, var, *, scale, ksize,
                      eps=1e-5):
    """Pure-JAX f32 reference (lax.conv) mirroring the PyTorch/MLX module."""
    B, C, T = x_bct.shape
    Cc = C // scale
    P = (ksize - 1) // 2
    chunks = [x_bct[:, i * Cc:(i + 1) * Cc, :] for i in range(scale)]
    ys = [chunks[0]]
    y_prev = None
    for i in range(1, scale):
        inp_bct = chunks[i] if i == 1 else chunks[i] + y_prev
        inp = jnp.transpose(inp_bct, (0, 2, 1))                 # [B, T, Cc]
        xp = jnp.pad(inp, ((0, 0), (P, P), (0, 0)))
        out = jax.lax.conv_general_dilated(
            xp, W[i - 1], window_strides=(1,), padding='VALID',
            dimension_numbers=('NWC', 'WIO', 'NWC'))
        out = out + b[i - 1, 0]
        out = jnp.maximum(out, 0.0)
        out = (out - mean[i - 1, 0]) / jnp.sqrt(var[i - 1, 0] + eps) \
            * gamma[i - 1, 0] + beta[i - 1, 0]
        y_prev = jnp.transpose(out, (0, 2, 1))                  # [B, Cc, T]
        ys.append(y_prev)
    return jnp.concatenate(ys, axis=1)


if __name__ == "__main__":
    # small shapes consistent with the module: in_channels == out_channels
    B, C, T = 2, 32, 16
    scale, K = 4, 3
    Cc = C // scale
    eps = 1e-5

    key = jax.random.PRNGKey(0)
    k_x, k_w, k_b, k_g, k_be, k_m, k_v = jax.random.split(key, 7)

    x = jax.random.normal(k_x, (B, C, T), jnp.float32)

    # deterministic synthetic parameters for the (scale-1) TDNN blocks
    W = 0.1 * jax.random.normal(k_w, (scale - 1, K, Cc, Cc), jnp.float32)  # [tap, in, out]
    b = 0.1 * jax.random.normal(k_b, (scale - 1, 1, Cc), jnp.float32)
    gamma = 1.0 + 0.1 * jax.random.normal(k_g, (scale - 1, 1, Cc), jnp.float32)
    beta = 0.1 * jax.random.normal(k_be, (scale - 1, 1, Cc), jnp.float32)
    mean = 0.05 * jax.random.normal(k_m, (scale - 1, 1, Cc), jnp.float32)
    var = 1.0 + 0.1 * jnp.abs(jax.random.normal(k_v, (scale - 1, 1, Cc), jnp.float32))

    out = res2net_block(x, W, b, gamma, beta, mean, var,
                        scale=scale, ksize=K, eps=eps)
    out = jax.block_until_ready(out)

    ref = res2net_reference(x, W, b, gamma, beta, mean, var,
                            scale=scale, ksize=K, eps=eps)
    assert out.shape == (B, C, T)
    # chunk 0 is exact (f32 pass-through); convolved chunks use bf16 matmul
    # operands and bf16 output -> looser tolerance vs the f32 reference.
    assert jnp.allclose(out, ref, atol=5e-2, rtol=5e-2), \
        f"max abs err {jnp.max(jnp.abs(out - ref))}"

    # TODO(synk): BatchNormLayer is implemented in inference mode (running
    # stats, folded to scale/shift); training-mode batch statistics are not
    # reproduced.
    print("KERNEL_OK")
</pallas_src>

<mosaic_0001>
module attributes {stable_mosaic.version = 11 : i64} {
  func.func @_res2net_kernel(%arg0: i32, %arg1: memref<3x32x8xbf16, #tpu.memory_space<vmem>>, %arg2: memref<3x24x8xbf16, #tpu.memory_space<vmem>>, %arg3: memref<3x1x8xf32, #tpu.memory_space<vmem>>, %arg4: memref<3x1x8xf32, #tpu.memory_space<vmem>>, %arg5: memref<3x1x8xf32, #tpu.memory_space<vmem>>, %arg6: memref<3x32x8xbf16, #tpu.memory_space<vmem>>, %arg7: memref<2x18x8xf32, #tpu.memory_space<vmem>>, %arg8: memref<32x24xbf16, #tpu.memory_space<vmem>>) attributes {dimension_semantics = [#tpu.dimension_semantics<parallel>], iteration_bounds = array<i64: 1>, scalar_prefetch = 0 : i64, scratch_operands = 2 : i64, tpu.core_type = #tpu.core_type<tc>, window_params = [{transform_indices = @transform_0, window_bounds = array<i64: 3, 32, 8>}, {pipeline_mode = #tpu.pipeline_mode<synchronous>, transform_indices = @transform_1, window_bounds = array<i64: 3, 24, 8>}, {pipeline_mode = #tpu.pipeline_mode<synchronous>, transform_indices = @transform_2, window_bounds = array<i64: 3, 1, 8>}, {pipeline_mode = #tpu.pipeline_mode<synchronous>, transform_indices = @transform_3, window_bounds = array<i64: 3, 1, 8>}, {pipeline_mode = #tpu.pipeline_mode<synchronous>, transform_indices = @transform_4, window_bounds = array<i64: 3, 1, 8>}, {transform_indices = @transform_5, window_bounds = array<i64: 3, 32, 8>}]} {
    %cst = arith.constant 0.000000e+00 : f32
    %0 = vector.broadcast %cst : f32 to vector<2x1x8xf32>
    %c0 = arith.constant 0 : index
    %c0_0 = arith.constant 0 : index
    %c0_1 = arith.constant 0 : index
    %1 = vector.load %arg7[%c0, %c0_0, %c0_1] : memref<2x18x8xf32, #tpu.memory_space<vmem>>, vector<2x1x8xf32>
    tpu.vector_store %arg7[%c0, %c0_0, %c0_1], %0 {strides = array<i32>} : memref<2x18x8xf32, #tpu.memory_space<vmem>>, vector<2x1x8xf32>,
    %c0_2 = arith.constant 0 : index
    %c17 = arith.constant 17 : index
    %c0_3 = arith.constant 0 : index
    %2 = vector.load %arg7[%c0_2, %c17, %c0_3] : memref<2x18x8xf32, #tpu.memory_space<vmem>>, vector<2x1x8xf32>
    tpu.vector_store %arg7[%c0_2, %c17, %c0_3], %0 {strides = array<i32>} : memref<2x18x8xf32, #tpu.memory_space<vmem>>, vector<2x1x8xf32>,
    %c0_4 = arith.constant 0 : index
    %c0_5 = arith.constant 0 : index
    %c0_6 = arith.constant 0 : index
    %3 = vector.load %arg1[%c0_4, %c0_5, %c0_6] : memref<3x32x8xbf16, #tpu.memory_space<vmem>>, vector<1x32x8xbf16>
    %4 = vector.shape_cast %3 : vector<1x32x8xbf16> to vector<32x8xbf16>
    %5 = arith.extf %4 : vector<32x8xbf16> to vector<32x8xf32>
    %6 = vector.extract_strided_slice %5 {offsets = [0, 0], sizes = [16, 8], strides = [1, 1]} : vector<32x8xf32> to vector<16x8xf32>
    %c0_7 = arith.constant 0 : index
    %c1 = arith.constant 1 : index
    %c0_8 = arith.constant 0 : index
    %7 = vector.load %arg7[%c0_7, %c1, %c0_8] : memref<2x18x8xf32, #tpu.memory_space<vmem>>, vector<1x16x8xf32>
    %8 = vector.shape_cast %7 : vector<1x16x8xf32> to vector<16x8xf32>
    %9 = vector.shape_cast %6 : vector<16x8xf32> to vector<1x16x8xf32>
    tpu.vector_store %arg7[%c0_7, %c1, %c0_8], %9 {strides = array<i32>} : memref<2x18x8xf32, #tpu.memory_space<vmem>>, vector<1x16x8xf32>,
    %10 = vector.extract_strided_slice %5 {offsets = [16, 0], sizes = [16, 8], strides = [1, 1]} : vector<32x8xf32> to vector<16x8xf32>
    %c1_9 = arith.constant 1 : index
    %c1_10 = arith.constant 1 : index
    %c0_11 = arith.constant 0 : index
    %11 = vector.load %arg7[%c1_9, %c1_10, %c0_11] : memref<2x18x8xf32, #tpu.memory_space<vmem>>, vector<1x16x8xf32>
    %12 = vector.shape_cast %11 : vector<1x16x8xf32> to vector<16x8xf32>
    %13 = vector.shape_cast %10 : vector<16x8xf32> to vector<1x16x8xf32>
    tpu.vector_store %arg7[%c1_9, %c1_10, %c0_11], %13 {strides = array<i32>} : memref<2x18x8xf32, #tpu.memory_space<vmem>>, vector<1x16x8xf32>,
    %c0_12 = arith.constant 0 : index
    %c0_13 = arith.constant 0 : index
    %c0_14 = arith.constant 0 : index
    %14 = vector.load %arg7[%c0_12, %c0_13, %c0_14] : memref<2x18x8xf32, #tpu.memory_space<vmem>>, vector<1x16x8xf32>
    %15 = vector.shape_cast %14 : vector<1x16x8xf32> to vector<16x8xf32>
    %16 = arith.truncf %15 : vector<16x8xf32> to vector<16x8xbf16>
    %c0_15 = arith.constant 0 : index
    %c0_16 = arith.constant 0 : index
    %17 = vector.load %arg8[%c0_15, %c0_16] : memref<32x24xbf16, #tpu.memory_space<vmem>>, vector<16x8xbf16>
    tpu.vector_store %arg8[%c0_15, %c0_16], %16 {strides = array<i32>} : memref<32x24xbf16, #tpu.memory_space<vmem>>, vector<16x8xbf16>,
    %c0_17 = arith.constant 0 : index
    %c1_18 = arith.constant 1 : index
    %c0_19 = arith.constant 0 : index
    %18 = vector.load %arg7[%c0_17, %c1_18, %c0_19] : memref<2x18x8xf32, #tpu.memory_space<vmem>>, vector<1x16x8xf32>
    %19 = vector.shape_cast %18 : vector<1x16x8xf32> to vector<16x8xf32>
    %20 = arith.truncf %19 : vector<16x8xf32> to vector<16x8xbf16>
    %c0_20 = arith.constant 0 : index
    %c8 = arith.constant 8 : index
    %21 = vector.load %arg8[%c0_20, %c8] : memref<32x24xbf16, #tpu.memory_space<vmem>>, vector<16x8xbf16>
    tpu.vector_store %arg8[%c0_20, %c8], %20 {strides = array<i32>} : memref<32x24xbf16, #tpu.memory_space<vmem>>, vector<16x8xbf16>,
    %c0_21 = arith.constant 0 : index
    %c2 = arith.constant 2 : index
    %c0_22 = arith.constant 0 : index
    %22 = vector.load %arg7[%c0_21, %c2, %c0_22] : memref<2x18x8xf32, #tpu.memory_space<vmem>>, vector<1x16x8xf32>
    %23 = vector.shape_cast %22 : vector<1x16x8xf32> to vector<16x8xf32>
    %24 = arith.truncf %23 : vector<16x8xf32> to vector<16x8xbf16>
    %c0_23 = arith.constant 0 : index
    %c16 = arith.constant 16 : index
    %25 = vector.load %arg8[%c0_23, %c16] : memref<32x24xbf16, #tpu.memory_space<vmem>>, vector<16x8xbf16>
    tpu.vector_store %arg8[%c0_23, %c16], %24 {strides = array<i32>} : memref<32x24xbf16, #tpu.memory_space<vmem>>, vector<16x8xbf16>,
    %c1_24 = arith.constant 1 : index
    %c0_25 = arith.constant 0 : index
    %c0_26 = arith.constant 0 : index
    %26 = vector.load %arg7[%c1_24, %c0_25, %c0_26] : memref<2x18x8xf32, #tpu.memory_space<vmem>>, vector<1x16x8xf32>
    %27 = vector.shape_cast %26 : vector<1x16x8xf32> to vector<16x8xf32>
    %28 = arith.truncf %27 : vector<16x8xf32> to vector<16x8xbf16>
    %c16_27 = arith.constant 16 : index
    %c0_28 = arith.constant 0 : index
    %29 = vector.load %arg8[%c16_27, %c0_28] : memref<32x24xbf16, #tpu.memory_space<vmem>>, vector<16x8xbf16>
    tpu.vector_store %arg8[%c16_27, %c0_28], %28 {strides = array<i32>} : memref<32x24xbf16, #tpu.memory_space<vmem>>, vector<16x8xbf16>,
    %c1_29 = arith.constant 1 : index
    %c1_30 = arith.constant 1 : index
    %c0_31 = arith.constant 0 : index
    %30 = vector.load %arg7[%c1_29, %c1_30, %c0_31] : memref<2x18x8xf32, #tpu.memory_space<vmem>>, vector<1x16x8xf32>
    %31 = vector.shape_cast %30 : vector<1x16x8xf32> to vector<16x8xf32>
    %32 = arith.truncf %31 : vector<16x8xf32> to vector<16x8xbf16>
    %c16_32 = arith.constant 16 : index
    %c8_33 = arith.constant 8 : index
    %33 = vector.load %arg8[%c16_32, %c8_33] : memref<32x24xbf16, #tpu.memory_space<vmem>>, vector<16x8xbf16>
    tpu.vector_store %arg8[%c16_32, %c8_33], %32 {strides = array<i32>} : memref<32x24xbf16, #tpu.memory_space<vmem>>, vector<16x8xbf16>,
    %c1_34 = arith.constant 1 : index
    %c2_35 = arith.constant 2 : index
    %c0_36 = arith.constant 0 : index
    %34 = vector.load %arg7[%c1_34, %c2_35, %c0_36] : memref<2x18x8xf32, #tpu.memory_space<vmem>>, vector<1x16x8xf32>
    %35 = vector.shape_cast %34 : vector<1x16x8xf32> to vector<16x8xf32>
    %36 = arith.truncf %35 : vector<16x8xf32> to vector<16x8xbf16>
    %c16_37 = arith.constant 16 : index
    %c16_38 = arith.constant 16 : index
    %37 = vector.load %arg8[%c16_37, %c16_38] : memref<32x24xbf16, #tpu.memory_space<vmem>>, vector<16x8xbf16>
    tpu.vector_store %arg8[%c16_37, %c16_38], %36 {strides = array<i32>} : memref<32x24xbf16, #tpu.memory_space<vmem>>, vector<16x8xbf16>,
    %c0_39 = arith.constant 0 : index
    %c0_40 = arith.constant 0 : index
    %38 = vector.load %arg8[%c0_39, %c0_40] : memref<32x24xbf16, #tpu.memory_space<vmem>>, vector<32x24xbf16>
    %c0_41 = arith.constant 0 : index
    %c0_42 = arith.constant 0 : index
    %c0_43 = arith.constant 0 : index
    %39 = vector.load %arg2[%c0_41, %c0_42, %c0_43] : memref<3x24x8xbf16, #tpu.memory_space<vmem>>, vector<1x24x8xbf16>
    %40 = vector.shape_cast %39 : vector<1x24x8xbf16> to vector<24x8xbf16>
    %cst_44 = arith.constant dense<0.000000e+00> : vector<32x8xf32>
    %41 = tpu.matmul %38, %40, %cst_44 {dimension_numbers = #tpu.dot_dimension_numbers<[1], [0], [0], [1], [0, 0, 1, 1], [], []>} : vector<32x24xbf16>, vector<24x8xbf16>, vector<32x8xf32> -> vector<32x8xf32>
    %c0_45 = arith.constant 0 : index
    %c0_46 = arith.constant 0 : index
    %c0_47 = arith.constant 0 : index
    %42 = vector.load %arg3[%c0_45, %c0_46, %c0_47] : memref<3x1x8xf32, #tpu.memory_space<vmem>>, vector<1x1x8xf32>
    %43 = vector.shape_cast %42 : vector<1x1x8xf32> to vector<1x8xf32>
    %44 = vector.broadcast %43 : vector<1x8xf32> to vector<32x8xf32>
    %45 = arith.addf %41, %44 : vector<32x8xf32>
    %cst_48 = arith.constant 0.000000e+00 : f32
    %46 = vector.broadcast %cst_48 : f32 to vector<32x8xf32>
    %47 = arith.maximumf %45, %46 : vector<32x8xf32>
    %c0_49 = arith.constant 0 : index
    %c0_50 = arith.constant 0 : index
    %c0_51 = arith.constant 0 : index
    %48 = vector.load %arg4[%c0_49, %c0_50, %c0_51] : memref<3x1x8xf32, #tpu.memory_space<vmem>>, vector<1x1x8xf32>
    %49 = vector.shape_cast %48 : vector<1x1x8xf32> to vector<1x8xf32>
    %50 = vector.broadcast %49 : vector<1x8xf32> to vector<32x8xf32>
    %51 = arith.mulf %47, %50 : vector<32x8xf32>
    %c0_52 = arith.constant 0 : index
    %c0_53 = arith.constant 0 : index
    %c0_54 = arith.constant 0 : index
    %52 = vector.load %arg5[%c0_52, %c0_53, %c0_54] : memref<3x1x8xf32, #tpu.memory_space<vmem>>, vector<1x1x8xf32>
    %53 = vector.shape_cast %52 : vector<1x1x8xf32> to vector<1x8xf32>
    %54 = vector.broadcast %53 : vector<1x8xf32> to vector<32x8xf32>
    %55 = arith.addf %51, %54 : vector<32x8xf32>
    %56 = arith.truncf %55 : vector<32x8xf32> to vector<32x8xbf16>
    %c0_55 = arith.constant 0 : index
    %c0_56 = arith.constant 0 : index
    %c0_57 = arith.constant 0 : index
    %57 = vector.load %arg6[%c0_55, %c0_56, %c0_57] : memref<3x32x8xbf16, #tpu.memory_space<vmem>>, vector<1x32x8xbf16>
    %58 = vector.shape_cast %57 : vector<1x32x8xbf16> to vector<32x8xbf16>
    %59 = vector.shape_cast %56 : vector<32x8xbf16> to vector<1x32x8xbf16>
    tpu.vector_store %arg6[%c0_55, %c0_56, %c0_57], %59 {strides = array<i32>} : memref<3x32x8xbf16, #tpu.memory_space<vmem>>, vector<1x32x8xbf16>,
    %c1_58 = arith.constant 1 : index
    %c0_59 = arith.constant 0 : index
    %c0_60 = arith.constant 0 : index
    %60 = vector.load %arg1[%c1_58, %c0_59, %c0_60] : memref<3x32x8xbf16, #tpu.memory_space<vmem>>, vector<1x32x8xbf16>
    %61 = vector.shape_cast %60 : vector<1x32x8xbf16> to vector<32x8xbf16>
    %62 = arith.extf %61 : vector<32x8xbf16> to vector<32x8xf32>
    %63 = arith.addf %62, %55 : vector<32x8xf32>
    %64 = vector.extract_strided_slice %63 {offsets = [0, 0], sizes = [16, 8], strides = [1, 1]} : vector<32x8xf32> to vector<16x8xf32>
    %c0_61 = arith.constant 0 : index
    %c1_62 = arith.constant 1 : index
    %c0_63 = arith.constant 0 : index
    %65 = vector.load %arg7[%c0_61, %c1_62, %c0_63] : memref<2x18x8xf32, #tpu.memory_space<vmem>>, vector<1x16x8xf32>
    %66 = vector.shape_cast %65 : vector<1x16x8xf32> to vector<16x8xf32>
    %67 = vector.shape_cast %64 : vector<16x8xf32> to vector<1x16x8xf32>
    tpu.vector_store %arg7[%c0_61, %c1_62, %c0_63], %67 {strides = array<i32>} : memref<2x18x8xf32, #tpu.memory_space<vmem>>, vector<1x16x8xf32>,
    %68 = vector.extract_strided_slice %63 {offsets = [16, 0], sizes = [16, 8], strides = [1, 1]} : vector<32x8xf32> to vector<16x8xf32>
    %c1_64 = arith.constant 1 : index
    %c1_65 = arith.constant 1 : index
    %c0_66 = arith.constant 0 : index
    %69 = vector.load %arg7[%c1_64, %c1_65, %c0_66] : memref<2x18x8xf32, #tpu.memory_space<vmem>>, vector<1x16x8xf32>
    %70 = vector.shape_cast %69 : vector<1x16x8xf32> to vector<16x8xf32>
    %71 = vector.shape_cast %68 : vector<16x8xf32> to vector<1x16x8xf32>
    tpu.vector_store %arg7[%c1_64, %c1_65, %c0_66], %71 {strides = array<i32>} : memref<2x18x8xf32, #tpu.memory_space<vmem>>, vector<1x16x8xf32>,
    %c0_67 = arith.constant 0 : index
    %c0_68 = arith.constant 0 : index
    %c0_69 = arith.constant 0 : index
    %72 = vector.load %arg7[%c0_67, %c0_68, %c0_69] : memref<2x18x8xf32, #tpu.memory_space<vmem>>, vector<1x16x8xf32>
    %73 = vector.shape_cast %72 : vector<1x16x8xf32> to vector<16x8xf32>
    %74 = arith.truncf %73 : vector<16x8xf32> to vector<16x8xbf16>
    %c0_70 = arith.constant 0 : index
    %c0_71 = arith.constant 0 : index
    %75 = vector.load %arg8[%c0_70, %c0_71] : memref<32x24xbf16, #tpu.memory_space<vmem>>, vector<16x8xbf16>
    tpu.vector_store %arg8[%c0_70, %c0_71], %74 {strides = array<i32>} : memref<32x24xbf16, #tpu.memory_space<vmem>>, vector<16x8xbf16>,
    %c0_72 = arith.constant 0 : index
    %c1_73 = arith.constant 1 : index
    %c0_74 = arith.constant 0 : index
    %76 = vector.load %arg7[%c0_72, %c1_73, %c0_74] : memref<2x18x8xf32, #tpu.memory_space<vmem>>, vector<1x16x8xf32>
    %77 = vector.shape_cast %76 : vector<1x16x8xf32> to vector<16x8xf32>
    %78 = arith.truncf %77 : vector<16x8xf32> to vector<16x8xbf16>
    %c0_75 = arith.constant 0 : index
    %c8_76 = arith.constant 8 : index
    %79 = vector.load %arg8[%c0_75, %c8_76] : memref<32x24xbf16, #tpu.memory_space<vmem>>, vector<16x8xbf16>
    tpu.vector_store %arg8[%c0_75, %c8_76], %78 {strides = array<i32>} : memref<32x24xbf16, #tpu.memory_space<vmem>>, vector<16x8xbf16>,
    %c0_77 = arith.constant 0 : index
    %c2_78 = arith.constant 2 : index
    %c0_79 = arith.constant 0 : index
    %80 = vector.load %arg7[%c0_77, %c2_78, %c0_79] : memref<2x18x8xf32, #tpu.memory_space<vmem>>, vector<1x16x8xf32>
    %81 = vector.shape_cast %80 : vector<1x16x8xf32> to vector<16x8xf32>
    %82 = arith.truncf %81 : vector<16x8xf32> to vector<16x8xbf16>
    %c0_80 = arith.constant 0 : index
    %c16_81 = arith.constant 16 : index
    %83 = vector.load %arg8[%c0_80, %c16_81] : memref<32x24xbf16, #tpu.memory_space<vmem>>, vector<16x8xbf16>
    tpu.vector_store %arg8[%c0_80, %c16_81], %82 {strides = array<i32>} : memref<32x24xbf16, #tpu.memory_space<vmem>>, vector<16x8xbf16>,
    %c1_82 = arith.constant 1 : index
    %c0_83 = arith.constant 0 : index
    %c0_84 = arith.constant 0 : index
    %84 = vector.load %arg7[%c1_82, %c0_83, %c0_84] : memref<2x18x8xf32, #tpu.memory_space<vmem>>, vector<1x16x8xf32>
    %85 = vector.shape_cast %84 : vector<1x16x8xf32> to vector<16x8xf32>
    %86 = arith.truncf %85 : vector<16x8xf32> to vector<16x8xbf16>
    %c16_85 = arith.constant 16 : index
    %c0_86 = arith.constant 0 : index
    %87 = vector.load %arg8[%c16_85, %c0_86] : memref<32x24xbf16, #tpu.memory_space<vmem>>, vector<16x8xbf16>
    tpu.vector_store %arg8[%c16_85, %c0_86], %86 {strides = array<i32>} : memref<32x24xbf16, #tpu.memory_space<vmem>>, vector<16x8xbf16>,
    %c1_87 = arith.constant 1 : index
    %c1_88 = arith.constant 1 : index
    %c0_89 = arith.constant 0 : index
    %88 = vector.load %arg7[%c1_87, %c1_88, %c0_89] : memref<2x18x8xf32, #tpu.memory_space<vmem>>, vector<1x16x8xf32>
    %89 = vector.shape_cast %88 : vector<1x16x8xf32> to vector<16x8xf32>
    %90 = arith.truncf %89 : vector<16x8xf32> to vector<16x8xbf16>
    %c16_90 = arith.constant 16 : index
    %c8_91 = arith.constant 8 : index
    %91 = vector.load %arg8[%c16_90, %c8_91] : memref<32x24xbf16, #tpu.memory_space<vmem>>, vector<16x8xbf16>
    tpu.vector_store %arg8[%c16_90, %c8_91], %90 {strides = array<i32>} : memref<32x24xbf16, #tpu.memory_space<vmem>>, vector<16x8xbf16>,
    %c1_92 = arith.constant 1 : index
    %c2_93 = arith.constant 2 : index
    %c0_94 = arith.constant 0 : index
    %92 = vector.load %arg7[%c1_92, %c2_93, %c0_94] : memref<2x18x8xf32, #tpu.memory_space<vmem>>, vector<1x16x8xf32>
    %93 = vector.shape_cast %92 : vector<1x16x8xf32> to vector<16x8xf32>
    %94 = arith.truncf %93 : vector<16x8xf32> to vector<16x8xbf16>
    %c16_95 = arith.constant 16 : index
    %c16_96 = arith.constant 16 : index
    %95 = vector.load %arg8[%c16_95, %c16_96] : memref<32x24xbf16, #tpu.memory_space<vmem>>, vector<16x8xbf16>
    tpu.vector_store %arg8[%c16_95, %c16_96], %94 {strides = array<i32>} : memref<32x24xbf16, #tpu.memory_space<vmem>>, vector<16x8xbf16>,
    %c0_97 = arith.constant 0 : index
    %c0_98 = arith.constant 0 : index
    %96 = vector.load %arg8[%c0_97, %c0_98] : memref<32x24xbf16, #tpu.memory_space<vmem>>, vector<32x24xbf16>
    %c1_99 = arith.constant 1 : index
    %c0_100 = arith.constant 0 : index
    %c0_101 = arith.constant 0 : index
    %97 = vector.load %arg2[%c1_99, %c0_100, %c0_101] : memref<3x24x8xbf16, #tpu.memory_space<vmem>>, vector<1x24x8xbf16>
    %98 = vector.shape_cast %97 : vector<1x24x8xbf16> to vector<24x8xbf16>
    %cst_102 = arith.constant dense<0.000000e+00> : vector<32x8xf32>
    %99 = tpu.matmul %96, %98, %cst_102 {dimension_numbers = #tpu.dot_dimension_numbers<[1], [0], [0], [1], [0, 0, 1, 1], [], []>} : vector<32x24xbf16>, vector<24x8xbf16>, vector<32x8xf32> -> vector<32x8xf32>
    %c1_103 = arith.constant 1 : index
    %c0_104 = arith.constant 0 : index
    %c0_105 = arith.constant 0 : index
    %100 = vector.load %arg3[%c1_103, %c0_104, %c0_105] : memref<3x1x8xf32, #tpu.memory_space<vmem>>, vector<1x1x8xf32>
    %101 = vector.shape_cast %100 : vector<1x1x8xf32> to vector<1x8xf32>
    %102 = vector.broadcast %101 : vector<1x8xf32> to vector<32x8xf32>
    %103 = arith.addf %99, %102 : vector<32x8xf32>
    %cst_106 = arith.constant 0.000000e+00 : f32
    %104 = vector.broadcast %cst_106 : f32 to vector<32x8xf32>
    %105 = arith.maximumf %103, %104 : vector<32x8xf32>
    %c1_107 = arith.constant 1 : index
    %c0_108 = arith.constant 0 : index
    %c0_109 = arith.constant 0 : index
    %106 = vector.load %arg4[%c1_107, %c0_108, %c0_109] : memref<3x1x8xf32, #tpu.memory_space<vmem>>, vector<1x1x8xf32>
    %107 = vector.shape_cast %106 : vector<1x1x8xf32> to vector<1x8xf32>
    %108 = vector.broadcast %107 : vector<1x8xf32> to vector<32x8xf32>
    %109 = arith.mulf %105, %108 : vector<32x8xf32>
    %c1_110 = arith.constant 1 : index
    %c0_111 = arith.constant 0 : index
    %c0_112 = arith.constant 0 : index
    %110 = vector.load %arg5[%c1_110, %c0_111, %c0_112] : memref<3x1x8xf32, #tpu.memory_space<vmem>>, vector<1x1x8xf32>
    %111 = vector.shape_cast %110 : vector<1x1x8xf32> to vector<1x8xf32>
    %112 = vector.broadcast %111 : vector<1x8xf32> to vector<32x8xf32>
    %113 = arith.addf %109, %112 : vector<32x8xf32>
    %114 = arith.truncf %113 : vector<32x8xf32> to vector<32x8xbf16>
    %c1_113 = arith.constant 1 : index
    %c0_114 = arith.constant 0 : index
    %c0_115 = arith.constant 0 : index
    %115 = vector.load %arg6[%c1_113, %c0_114, %c0_115] : memref<3x32x8xbf16, #tpu.memory_space<vmem>>, vector<1x32x8xbf16>
    %116 = vector.shape_cast %115 : vector<1x32x8xbf16> to vector<32x8xbf16>
    %117 = vector.shape_cast %114 : vector<32x8xbf16> to vector<1x32x8xbf16>
    tpu.vector_store %arg6[%c1_113, %c0_114, %c0_115], %117 {strides = array<i32>} : memref<3x32x8xbf16, #tpu.memory_space<vmem>>, vector<1x32x8xbf16>,
    %c2_116 = arith.constant 2 : index
    %c0_117 = arith.constant 0 : index
    %c0_118 = arith.constant 0 : index
    %118 = vector.load %arg1[%c2_116, %c0_117, %c0_118] : memref<3x32x8xbf16, #tpu.memory_space<vmem>>, vector<1x32x8xbf16>
    %119 = vector.shape_cast %118 : vector<1x32x8xbf16> to vector<32x8xbf16>
    %120 = arith.extf %119 : vector<32x8xbf16> to vector<32x8xf32>
    %121 = arith.addf %120, %113 : vector<32x8xf32>
    %122 = vector.extract_strided_slice %121 {offsets = [0, 0], sizes = [16, 8], strides = [1, 1]} : vector<32x8xf32> to vector<16x8xf32>
    %c0_119 = arith.constant 0 : index
    %c1_120 = arith.constant 1 : index
    %c0_121 = arith.constant 0 : index
    %123 = vector.load %arg7[%c0_119, %c1_120, %c0_121] : memref<2x18x8xf32, #tpu.memory_space<vmem>>, vector<1x16x8xf32>
    %124 = vector.shape_cast %123 : vector<1x16x8xf32> to vector<16x8xf32>
    %125 = vector.shape_cast %122 : vector<16x8xf32> to vector<1x16x8xf32>
    tpu.vector_store %arg7[%c0_119, %c1_120, %c0_121], %125 {strides = array<i32>} : memref<2x18x8xf32, #tpu.memory_space<vmem>>, vector<1x16x8xf32>,
    %126 = vector.extract_strided_slice %121 {offsets = [16, 0], sizes = [16, 8], strides = [1, 1]} : vector<32x8xf32> to vector<16x8xf32>
    %c1_122 = arith.constant 1 : index
    %c1_123 = arith.constant 1 : index
    %c0_124 = arith.constant 0 : index
    %127 = vector.load %arg7[%c1_122, %c1_123, %c0_124] : memref<2x18x8xf32, #tpu.memory_space<vmem>>, vector<1x16x8xf32>
    %128 = vector.shape_cast %127 : vector<1x16x8xf32> to vector<16x8xf32>
    %129 = vector.shape_cast %126 : vector<16x8xf32> to vector<1x16x8xf32>
    tpu.vector_store %arg7[%c1_122, %c1_123, %c0_124], %129 {strides = array<i32>} : memref<2x18x8xf32, #tpu.memory_space<vmem>>, vector<1x16x8xf32>,
    %c0_125 = arith.constant 0 : index
    %c0_126 = arith.constant 0 : index
    %c0_127 = arith.constant 0 : index
    %130 = vector.load %arg7[%c0_125, %c0_126, %c0_127] : memref<2x18x8xf32, #tpu.memory_space<vmem>>, vector<1x16x8xf32>
    %131 = vector.shape_cast %130 : vector<1x16x8xf32> to vector<16x8xf32>
    %132 = arith.truncf %131 : vector<16x8xf32> to vector<16x8xbf16>
    %c0_128 = arith.constant 0 : index
    %c0_129 = arith.constant 0 : index
    %133 = vector.load %arg8[%c0_128, %c0_129] : memref<32x24xbf16, #tpu.memory_space<vmem>>, vector<16x8xbf16>
    tpu.vector_store %arg8[%c0_128, %c0_129], %132 {strides = array<i32>} : memref<32x24xbf16, #tpu.memory_space<vmem>>, vector<16x8xbf16>,
    %c0_130 = arith.constant 0 : index
    %c1_131 = arith.constant 1 : index
    %c0_132 = arith.constant 0 : index
    %134 = vector.load %arg7[%c0_130, %c1_131, %c0_132] : memref<2x18x8xf32, #tpu.memory_space<vmem>>, vector<1x16x8xf32>
    %135 = vector.shape_cast %134 : vector<1x16x8xf32> to vector<16x8xf32>
    %136 = arith.truncf %135 : vector<16x8xf32> to vector<16x8xbf16>
    %c0_133 = arith.constant 0 : index
    %c8_134 = arith.constant 8 : index
    %137 = vector.load %arg8[%c0_133, %c8_134] : memref<32x24xbf16, #tpu.memory_space<vmem>>, vector<16x8xbf16>
    tpu.vector_store %arg8[%c0_133, %c8_134], %136 {strides = array<i32>} : memref<32x24xbf16, #tpu.memory_space<vmem>>, vector<16x8xbf16>,
    %c0_135 = arith.constant 0 : index
    %c2_136 = arith.constant 2 : index
    %c0_137 = arith.constant 0 : index
    %138 = vector.load %arg7[%c0_135, %c2_136, %c0_137] : memref<2x18x8xf32, #tpu.memory_space<vmem>>, vector<1x16x8xf32>
    %139 = vector.shape_cast %138 : vector<1x16x8xf32> to vector<16x8xf32>
    %140 = arith.truncf %139 : vector<16x8xf32> to vector<16x8xbf16>
    %c0_138 = arith.constant 0 : index
    %c16_139 = arith.constant 16 : index
    %141 = vector.load %arg8[%c0_138, %c16_139] : memref<32x24xbf16, #tpu.memory_space<vmem>>, vector<16x8xbf16>
    tpu.vector_store %arg8[%c0_138, %c16_139], %140 {strides = array<i32>} : memref<32x24xbf16, #tpu.memory_space<vmem>>, vector<16x8xbf16>,
    %c1_140 = arith.constant 1 : index
    %c0_141 = arith.constant 0 : index
    %c0_142 = arith.constant 0 : index
    %142 = vector.load %arg7[%c1_140, %c0_141, %c0_142] : memref<2x18x8xf32, #tpu.memory_space<vmem>>, vector<1x16x8xf32>
    %143 = vector.shape_cast %142 : vector<1x16x8xf32> to vector<16x8xf32>
    %144 = arith.truncf %143 : vector<16x8xf32> to vector<16x8xbf16>
    %c16_143 = arith.constant 16 : index
    %c0_144 = arith.constant 0 : index
    %145 = vector.load %arg8[%c16_143, %c0_144] : memref<32x24xbf16, #tpu.memory_space<vmem>>, vector<16x8xbf16>
    tpu.vector_store %arg8[%c16_143, %c0_144], %144 {strides = array<i32>} : memref<32x24xbf16, #tpu.memory_space<vmem>>, vector<16x8xbf16>,
    %c1_145 = arith.constant 1 : index
    %c1_146 = arith.constant 1 : index
    %c0_147 = arith.constant 0 : index
    %146 = vector.load %arg7[%c1_145, %c1_146, %c0_147] : memref<2x18x8xf32, #tpu.memory_space<vmem>>, vector<1x16x8xf32>
    %147 = vector.shape_cast %146 : vector<1x16x8xf32> to vector<16x8xf32>
    %148 = arith.truncf %147 : vector<16x8xf32> to vector<16x8xbf16>
    %c16_148 = arith.constant 16 : index
    %c8_149 = arith.constant 8 : index
    %149 = vector.load %arg8[%c16_148, %c8_149] : memref<32x24xbf16, #tpu.memory_space<vmem>>, vector<16x8xbf16>
    tpu.vector_store %arg8[%c16_148, %c8_149], %148 {strides = array<i32>} : memref<32x24xbf16, #tpu.memory_space<vmem>>, vector<16x8xbf16>,
    %c1_150 = arith.constant 1 : index
    %c2_151 = arith.constant 2 : index
    %c0_152 = arith.constant 0 : index
    %150 = vector.load %arg7[%c1_150, %c2_151, %c0_152] : memref<2x18x8xf32, #tpu.memory_space<vmem>>, vector<1x16x8xf32>
    %151 = vector.shape_cast %150 : vector<1x16x8xf32> to vector<16x8xf32>
    %152 = arith.truncf %151 : vector<16x8xf32> to vector<16x8xbf16>
    %c16_153 = arith.constant 16 : index
    %c16_154 = arith.constant 16 : index
    %153 = vector.load %arg8[%c16_153, %c16_154] : memref<32x24xbf16, #tpu.memory_space<vmem>>, vector<16x8xbf16>
    tpu.vector_store %arg8[%c16_153, %c16_154], %152 {strides = array<i32>} : memref<32x24xbf16, #tpu.memory_space<vmem>>, vector<16x8xbf16>,
    %c0_155 = arith.constant 0 : index
    %c0_156 = arith.constant 0 : index
    %154 = vector.load %arg8[%c0_155, %c0_156] : memref<32x24xbf16, #tpu.memory_space<vmem>>, vector<32x24xbf16>
    %c2_157 = arith.constant 2 : index
    %c0_158 = arith.constant 0 : index
    %c0_159 = arith.constant 0 : index
    %155 = vector.load %arg2[%c2_157, %c0_158, %c0_159] : memref<3x24x8xbf16, #tpu.memory_space<vmem>>, vector<1x24x8xbf16>
    %156 = vector.shape_cast %155 : vector<1x24x8xbf16> to vector<24x8xbf16>
    %cst_160 = arith.constant dense<0.000000e+00> : vector<32x8xf32>
    %157 = tpu.matmul %154, %156, %cst_160 {dimension_numbers = #tpu.dot_dimension_numbers<[1], [0], [0], [1], [0, 0, 1, 1], [], []>} : vector<32x24xbf16>, vector<24x8xbf16>, vector<32x8xf32> -> vector<32x8xf32>
    %c2_161 = arith.constant 2 : index
    %c0_162 = arith.constant 0 : index
    %c0_163 = arith.constant 0 : index
    %158 = vector.load %arg3[%c2_161, %c0_162, %c0_163] : memref<3x1x8xf32, #tpu.memory_space<vmem>>, vector<1x1x8xf32>
    %159 = vector.shape_cast %158 : vector<1x1x8xf32> to vector<1x8xf32>
    %160 = vector.broadcast %159 : vector<1x8xf32> to vector<32x8xf32>
    %161 = arith.addf %157, %160 : vector<32x8xf32>
    %cst_164 = arith.constant 0.000000e+00 : f32
    %162 = vector.broadcast %cst_164 : f32 to vector<32x8xf32>
    %163 = arith.maximumf %161, %162 : vector<32x8xf32>
    %c2_165 = arith.constant 2 : index
    %c0_166 = arith.constant 0 : index
    %c0_167 = arith.constant 0 : index
    %164 = vector.load %arg4[%c2_165, %c0_166, %c0_167] : memref<3x1x8xf32, #tpu.memory_space<vmem>>, vector<1x1x8xf32>
    %165 = vector.shape_cast %164 : vector<1x1x8xf32> to vector<1x8xf32>
    %166 = vector.broadcast %165 : vector<1x8xf32> to vector<32x8xf32>
    %167 = arith.mulf %163, %166 : vector<32x8xf32>
    %c2_168 = arith.constant 2 : index
    %c0_169 = arith.constant 0 : index
    %c0_170 = arith.constant 0 : index
    %168 = vector.load %arg5[%c2_168, %c0_169, %c0_170] : memref<3x1x8xf32, #tpu.memory_space<vmem>>, vector<1x1x8xf32>
    %169 = vector.shape_cast %168 : vector<1x1x8xf32> to vector<1x8xf32>
    %170 = vector.broadcast %169 : vector<1x8xf32> to vector<32x8xf32>
    %171 = arith.addf %167, %170 : vector<32x8xf32>
    %172 = arith.truncf %171 : vector<32x8xf32> to vector<32x8xbf16>
    %c2_171 = arith.constant 2 : index
    %c0_172 = arith.constant 0 : index
    %c0_173 = arith.constant 0 : index
    %173 = vector.load %arg6[%c2_171, %c0_172, %c0_173] : memref<3x32x8xbf16, #tpu.memory_space<vmem>>, vector<1x32x8xbf16>
    %174 = vector.shape_cast %173 : vector<1x32x8xbf16> to vector<32x8xbf16>
    %175 = vector.shape_cast %172 : vector<32x8xbf16> to vector<1x32x8xbf16>
    tpu.vector_store %arg6[%c2_171, %c0_172, %c0_173], %175 {strides = array<i32>} : memref<3x32x8xbf16, #tpu.memory_space<vmem>>, vector<1x32x8xbf16>,
    return
  }
  func.func @transform_0(%arg0: i32) -> (i32, i32, i32) {
    %c0_i32 = arith.constant 0 : i32
    %c0_i32_0 = arith.constant 0 : i32
    %c0_i32_1 = arith.constant 0 : i32
    return %c0_i32, %arg0, %c0_i32_0 : i32, i32, i32
  }
  func.func @transform_1(%arg0: i32) -> (i32, i32, i32) {
    %c0_i32 = arith.constant 0 : i32
    %c0_i32_0 = arith.constant 0 : i32
    %c0_i32_1 = arith.constant 0 : i32
    %c0_i32_2 = arith.constant 0 : i32
    return %c0_i32, %c0_i32_0, %c0_i32_1 : i32, i32, i32
  }
  func.func @transform_2(%arg0: i32) -> (i32, i32, i32) {
    %c0_i32 = arith.constant 0 : i32
    %c0_i32_0 = arith.constant 0 : i32
    %c0_i32_1 = arith.constant 0 : i32
    %c0_i32_2 = arith.constant 0 : i32
    return %c0_i32, %c0_i32_0, %c0_i32_1 : i32, i32, i32
  }
  func.func @transform_3(%arg0: i32) -> (i32, i32, i32) {
    %c0_i32 = arith.constant 0 : i32
    %c0_i32_0 = arith.constant 0 : i32
    %c0_i32_1 = arith.constant 0 : i32
    %c0_i32_2 = arith.constant 0 : i32
    return %c0_i32, %c0_i32_0, %c0_i32_1 : i32, i32, i32
  }
  func.func @transform_4(%arg0: i32) -> (i32, i32, i32) {
    %c0_i32 = arith.constant 0 : i32
    %c0_i32_0 = arith.constant 0 : i32
    %c0_i32_1 = arith.constant 0 : i32
    %c0_i32_2 = arith.constant 0 : i32
    return %c0_i32, %c0_i32_0, %c0_i32_1 : i32, i32, i32
  }
  func.func @transform_5(%arg0: i32) -> (i32, i32, i32) {
    %c0_i32 = arith.constant 0 : i32
    %c0_i32_0 = arith.constant 0 : i32
    %c0_i32_1 = arith.constant 0 : i32
    return %c0_i32, %arg0, %c0_i32_0 : i32, i32, i32
  }
}

</mosaic_0001>

<llo_original>
// kernel: tpu_custom_call.1
$region0: #{tpu_custom_call.1}
  #allocation0 [shape = 'u32[]', space=smem, size = 0x4, offset = 0x4, fixed_abs, tag = 'smem constant byte address 0x4 - core index']
  #allocation1 [shape = 'u32[72,128]{1,0:T(1,128)}', space=vmem, size = 0x9000, scoped, tag = 'internal scratch']
  #allocation2 [shape = 'f32[2,18,8]{2,1,0:T(8,128)}', space=vmem, size = 0x6000, scoped, tag = 'scratch operand']
  #allocation3 [shape = 'bf16[32,24]{1,0:T(8,128)(2,1)}', space=vmem, size = 0x2000, scoped, tag = 'scratch operand']
  %s0 = inlined_call_operand.vmem [shape: bf16[3,32,8], index: 0, kind: input, shape index: {}]
  %s1 = inlined_call_operand.vmem [shape: bf16[3,24,8], index: 1, kind: input, shape index: {}]
  %s2 = inlined_call_operand.vmem [shape: f32[3,1,8], index: 2, kind: input, shape index: {}]
  %s3 = inlined_call_operand.vmem [shape: f32[3,1,8], index: 3, kind: input, shape index: {}]
  %s4 = inlined_call_operand.vmem [shape: f32[3,1,8], index: 4, kind: input, shape index: {}]
  %s5 = inlined_call_operand.vmem [shape: bf16[3,32,8], index: 5, kind: output, shape index: {}]
  %s6 = sld [smem:[#allocation0]]
  $region30: #{tpu_custom_call.1} parent=0
    _
  %s8 = ssub.s32 1, %s6
  %s9 = scalar_select 0, %s8, %s6
  // Predicated region
  $region2: #{tpu_custom_call.1} parent=0 // pred_check
    _
  $region3: #{tpu_custom_call.1} parent=0 // pred_check_branch
    %11 = sbr.rel (0) target = $region5
  $region4: #{tpu_custom_call.1} parent=0 // pred_region
    _
  $region5: #{tpu_custom_call.1} parent=0 // pred_fallthru
    _
  // Predicated region
  $region6: #{tpu_custom_call.1} parent=0 // pred_check
    _
  $region7: #{tpu_custom_call.1} parent=0 // pred_check_branch
    %13 = sbr.rel (0) target = $region9
  $region8: #{tpu_custom_call.1} parent=0 // pred_region
    _
  $region9: #{tpu_custom_call.1} parent=0 // pred_fallthru
    _
  // Predicated region
  $region10: #{tpu_custom_call.1} parent=0 // pred_check
    _
  $region11: #{tpu_custom_call.1} parent=0 // pred_check_branch
    %15 = sbr.rel (0) target = $region13
  $region12: #{tpu_custom_call.1} parent=0 // pred_region
    _
  $region13: #{tpu_custom_call.1} parent=0 // pred_fallthru
    _
  // Predicated region
  $region14: #{tpu_custom_call.1} parent=0 // pred_check
    _
  $region15: #{tpu_custom_call.1} parent=0 // pred_check_branch
    %17 = sbr.rel (0) target = $region17
  $region16: #{tpu_custom_call.1} parent=0 // pred_region
    _
  $region17: #{tpu_custom_call.1} parent=0 // pred_fallthru
    _
  // Predicated region
  $region18: #{tpu_custom_call.1} parent=0 // pred_check
    _
  $region19: #{tpu_custom_call.1} parent=0 // pred_check_branch
    %19 = sbr.rel (0) target = $region21
  $region20: #{tpu_custom_call.1} parent=0 // pred_region
    _
  $region21: #{tpu_custom_call.1} parent=0 // pred_fallthru
    _
  %vm21 = vcmask 57344
  %22 = vst.msk [vmem:[#allocation2] sm:$0x1] %vm21, 0.0
  %23 = vst.msk [vmem:[#allocation2 + $0x18] sm:$0x1] %vm21, 0.0
  %24 = vst.msk [vmem:[#allocation2 + $0x11] sm:$0x1] %vm21, 0.0
  %25 = vst.msk [vmem:[#allocation2 + $0x29] sm:$0x1] %vm21, 0.0
  %v26 = vld [vmem:[%s0] sm:$0xf]
  %v27 = vld [vmem:[%s0 + $0x4] sm:$0xf]
  %v28 = vld [vmem:[%s0 + $0x8] sm:$0xf]
  %v29 = vld [vmem:[%s0 + $0xc] sm:$0xf]
  %v30 = vunpack.c.l.bf16 %v26
  %v31 = vunpack.c.l.bf16 %v27
  %v32 = vunpack.c.l.bf16 %v28
  %v33 = vunpack.c.l.bf16 %v29
  %vm34 = vcmask 64512
  %35 = vst.msk [vmem:[#allocation2 + $0x1] sm:$0xff] %vm34, %v30
  %36 = vst.msk [vmem:[#allocation2 + $0x9] sm:$0xff] %vm34, %v31
  %s37 = scalar_lea.vmem [#allocation2], 24
  %38 = vst.msk [vmem:[%s37 + $0x1] sm:$0xff] %vm34, %v32
  %39 = vst.msk [vmem:[%s37 + $0x9] sm:$0xff] %vm34, %v33
  %v40 = vld [vmem:[#allocation2] sm:$0xff]
  %v41 = vld [vmem:[#allocation2 + $0x8] sm:$0xff]
  %v42 = vpack.c.bf16 %v40, %v40
  %v43 = vpack.c.bf16 %v41, %v41
  %vm44 = vcmask 60416
  %45 = vst.msk [vmem:[#allocation3] sm:$0xf] %vm44, %v42
  %46 = vst.msk [vmem:[#allocation3 + $0x4] sm:$0xf] %vm44, %v43
  %v47 = vld [vmem:[#allocation2 + $0x1] sm:$0xff]
  %v48 = vld [vmem:[#allocation2 + $0x9] sm:$0xff]
  %v49 = vpack.c.bf16 %v47, %v47
  %v50 = vpack.c.bf16 %v48, %v48
  %53 = vrot.lane.b32.xlu0 %v49, 8
  %v54 = vpop.permute.xlu0 %53
  %55 = vrot.lane.b32.xlu0 %v50, 8
  %v56 = vpop.permute.xlu0 %55
  %vm59 = vcmask 126016
  %60 = vst.msk [vmem:[#allocation3] sm:$0xf] %vm59, %v54
  %61 = vst.msk [vmem:[#allocation3 + $0x4] sm:$0xf] %vm59, %v56
  %v62 = vld [vmem:[#allocation2 + $0x2] sm:$0xff]
  %v63 = vld [vmem:[#allocation2 + $0xa] sm:$0xff]
  %v64 = vpack.c.bf16 %v62, %v62
  %v65 = vpack.c.bf16 %v63, %v63
  %68 = vrot.lane.b32.xlu0 %v64, 16
  %v69 = vpop.permute.xlu0 %68
  %70 = vrot.lane.b32.xlu0 %v65, 16
  %v71 = vpop.permute.xlu0 %70
  %vm74 = vcmask 191616
  %75 = vst.msk [vmem:[#allocation3] sm:$0xf] %vm74, %v69
  %76 = vst.msk [vmem:[#allocation3 + $0x4] sm:$0xf] %vm74, %v71
  %v77 = vld [vmem:[%s37] sm:$0xff]
  %v78 = vld [vmem:[%s37 + $0x8] sm:$0xff]
  %v79 = vpack.c.bf16 %v77, %v77
  %v80 = vpack.c.bf16 %v78, %v78
  %81 = vst.msk [vmem:[#allocation3 + $0x8] sm:$0xf] %vm44, %v79
  %82 = vst.msk [vmem:[#allocation3 + $0xc] sm:$0xf] %vm44, %v80
  %v83 = vld [vmem:[%s37 + $0x1] sm:$0xff]
  %v84 = vld [vmem:[%s37 + $0x9] sm:$0xff]
  %v85 = vpack.c.bf16 %v83, %v83
  %v86 = vpack.c.bf16 %v84, %v84
  %89 = vrot.lane.b32.xlu0 %v85, 8
  %v90 = vpop.permute.xlu0 %89
  %91 = vrot.lane.b32.xlu0 %v86, 8
  %v92 = vpop.permute.xlu0 %91
  %95 = vst.msk [vmem:[#allocation3 + $0x8] sm:$0xf] %vm59, %v90
  %96 = vst.msk [vmem:[#allocation3 + $0xc] sm:$0xf] %vm59, %v92
  %v97 = vld [vmem:[%s37 + $0x2] sm:$0xff]
  %v98 = vld [vmem:[%s37 + $0xa] sm:$0xff]
  %v99 = vpack.c.bf16 %v97, %v97
  %v100 = vpack.c.bf16 %v98, %v98
  %103 = vrot.lane.b32.xlu0 %v99, 16
  %v104 = vpop.permute.xlu0 %103
  %105 = vrot.lane.b32.xlu0 %v100, 16
  %v106 = vpop.permute.xlu0 %105
  %109 = vst.msk [vmem:[#allocation3 + $0x8] sm:$0xf] %vm74, %v104
  %110 = vst.msk [vmem:[#allocation3 + $0xc] sm:$0xf] %vm74, %v106
  %v111 = vld [vmem:[#allocation3] sm:$0xf]
  %v112 = vld [vmem:[#allocation3 + $0x4] sm:$0xf]
  %v113 = vld [vmem:[#allocation3 + $0x8] sm:$0xf]
  %v114 = vld [vmem:[#allocation3 + $0xc] sm:$0xf]
  %v115 = vld [vmem:[%s1] sm:$0xf]
  %v116 = vld [vmem:[%s1 + $0x4] sm:$0xf]
  %v117 = vld [vmem:[%s1 + $0x8] sm:$0xf]
  %v118 = vld [vmem:[%s2] sm:$0x1]
  %v120 = vperm.slane %v118, 0
  %v126 = vunpack.c.l.b16 %v111
  %v127 = vunpack.c.l.b16 %v112
  %v128 = vunpack.c.l.b16 %v113
  %v129 = vunpack.c.l.b16 %v114
  %v130 = vpack.c.b16 %v127, %v126
  %v131 = vpack.c.b16 %v129, %v128
  %v135 = vunpack.c.l.b16 %v115
  %v136 = vunpack.c.l.b16 %v116
  %v137 = vunpack.c.l.b16 %v117
  %v138 = vpack.c.b16 %v136, %v135
  %v139 = vpack.c.b16 %v137, %v137
  %vm141 = vcmask 195584
  %v143 = vsel %vm141, %v130, 0
  %v146 = vsel %vm141, %v131, 0
  %vm148 = vcmask 1043456
  %v150 = vsel %vm148, %v139, 0
  %152 = vmatpush.bf16.msra.mxu0 0
  %153 = vmatpush.bf16.msra.mxu0 0
  %154 = vmatpush.bf16.msra.mxu0 0
  %155 = vmatpush.bf16.msra.mxu0 0
  %156 = vmatpush.bf16.msra.mxu0 0
  %157 = vmatpush.bf16.msra.mxu0 0
  %158 = vmatpush.bf16.msra.mxu0 %v150
  %159 = vmatpush.bf16.msra.mxu0 %v138
  %160 = vmatmul.bf16.gmra.mxu0 %v143
  %v161 = vpop.f32.mrf.mxu0
  %v162 = vadd.f32 %v120, %v161
  %v163 = vpop.f32.mrf.mxu0
  %v164 = vadd.f32 %v120, %v163
  %165 = vmatmul.bf16.gmra.mxu0 %v146
  %v166 = vpop.f32.mrf.mxu0
  %v167 = vadd.f32 %v120, %v166
  %v168 = vpop.f32.mrf.mxu0
  %v169 = vadd.f32 %v120, %v168
  %170 = vdwg.mxu0
  %v171 = vmax.f32 %v162, 0.0
  %v172 = vmax.f32 %v164, 0.0
  %v173 = vmax.f32 %v167, 0.0
  %v174 = vmax.f32 %v169, 0.0
  %v175 = vld [vmem:[%s3] sm:$0x1]
  %v177 = vperm.slane %v175, 0
  %v179 = vmul.f32 %v171, %v177
  %v180 = vmul.f32 %v172, %v177
  %v181 = vmul.f32 %v173, %v177
  %v182 = vmul.f32 %v174, %v177
  %v183 = vld [vmem:[%s4] sm:$0x1]
  %v185 = vperm.slane %v183, 0
  %v187 = vadd.f32 %v179, %v185
  %v188 = vadd.f32 %v180, %v185
  %v189 = vadd.f32 %v181, %v185
  %v190 = vadd.f32 %v182, %v185
  %v191 = vpack.c.bf16 %v187, %v187
  %v192 = vpack.c.bf16 %v188, %v188
  %v193 = vpack.c.bf16 %v189, %v189
  %v194 = vpack.c.bf16 %v190, %v190
  %195 = vst.msk [vmem:[%s5] sm:$0xf] %vm44, %v191
  %196 = vst.msk [vmem:[%s5 + $0x4] sm:$0xf] %vm44, %v192
  %197 = vst.msk [vmem:[%s5 + $0x8] sm:$0xf] %vm44, %v193
  %198 = vst.msk [vmem:[%s5 + $0xc] sm:$0xf] %vm44, %v194
  %s199 = scalar_lea.vmem %s0, 16
  %v200 = vld [vmem:[%s199] sm:$0xf]
  %v201 = vld [vmem:[%s199 + $0x4] sm:$0xf]
  %v202 = vld [vmem:[%s199 + $0x8] sm:$0xf]
  %v203 = vld [vmem:[%s199 + $0xc] sm:$0xf]
  %v204 = vunpack.c.l.bf16 %v200
  %v205 = vunpack.c.l.bf16 %v201
  %v206 = vunpack.c.l.bf16 %v202
  %v207 = vunpack.c.l.bf16 %v203
  %v208 = vadd.f32 %v204, %v187
  %v209 = vadd.f32 %v205, %v188
  %v210 = vadd.f32 %v206, %v189
  %v211 = vadd.f32 %v207, %v190
  %212 = vst.msk [vmem:[#allocation2 + $0x1] sm:$0xff] %vm34, %v208
  %213 = vst.msk [vmem:[#allocation2 + $0x9] sm:$0xff] %vm34, %v209
  %214 = vst.msk [vmem:[%s37 + $0x1] sm:$0xff] %vm34, %v210
  %215 = vst.msk [vmem:[%s37 + $0x9] sm:$0xff] %vm34, %v211
  %v216 = vld [vmem:[#allocation2] sm:$0xff]
  %v217 = vld [vmem:[#allocation2 + $0x8] sm:$0xff]
  %v218 = vpack.c.bf16 %v216, %v216
  %v219 = vpack.c.bf16 %v217, %v217
  %220 = vst.msk [vmem:[#allocation3] sm:$0xf] %vm44, %v218
  %221 = vst.msk [vmem:[#allocation3 + $0x4] sm:$0xf] %vm44, %v219
  %v222 = vld [vmem:[#allocation2 + $0x1] sm:$0xff]
  %v223 = vld [vmem:[#allocation2 + $0x9] sm:$0xff]
  %v224 = vpack.c.bf16 %v222, %v222
  %v225 = vpack.c.bf16 %v223, %v223
  %228 = vrot.lane.b32.xlu0 %v224, 8
  %v229 = vpop.permute.xlu0 %228
  %230 = vrot.lane.b32.xlu0 %v225, 8
  %v231 = vpop.permute.xlu0 %230
  %234 = vst.msk [vmem:[#allocation3] sm:$0xf] %vm59, %v229
  %235 = vst.msk [vmem:[#allocation3 + $0x4] sm:$0xf] %vm59, %v231
  %v236 = vld [vmem:[#allocation2 + $0x2] sm:$0xff]
  %v237 = vld [vmem:[#allocation2 + $0xa] sm:$0xff]
  %v238 = vpack.c.bf16 %v236, %v236
  %v239 = vpack.c.bf16 %v237, %v237
  %242 = vrot.lane.b32.xlu0 %v238, 16
  %v243 = vpop.permute.xlu0 %242
  %244 = vrot.lane.b32.xlu0 %v239, 16
  %v245 = vpop.permute.xlu0 %244
  %248 = vst.msk [vmem:[#allocation3] sm:$0xf] %vm74, %v243
  %249 = vst.msk [vmem:[#allocation3 + $0x4] sm:$0xf] %vm74, %v245
  %v250 = vld [vmem:[%s37] sm:$0xff]
  %v251 = vld [vmem:[%s37 + $0x8] sm:$0xff]
  %v252 = vpack.c.bf16 %v250, %v250
  %v253 = vpack.c.bf16 %v251, %v251
  %254 = vst.msk [vmem:[#allocation3 + $0x8] sm:$0xf] %vm44, %v252
  %255 = vst.msk [vmem:[#allocation3 + $0xc] sm:$0xf] %vm44, %v253
  %v256 = vld [vmem:[%s37 + $0x1] sm:$0xff]
  %v257 = vld [vmem:[%s37 + $0x9] sm:$0xff]
  %v258 = vpack.c.bf16 %v256, %v256
  %v259 = vpack.c.bf16 %v257, %v257
  %262 = vrot.lane.b32.xlu0 %v258, 8
  %v263 = vpop.permute.xlu0 %262
  %264 = vrot.lane.b32.xlu0 %v259, 8
  %v265 = vpop.permute.xlu0 %264
  %268 = vst.msk [vmem:[#allocation3 + $0x8] sm:$0xf] %vm59, %v263
  %269 = vst.msk [vmem:[#allocation3 + $0xc] sm:$0xf] %vm59, %v265
  %v270 = vld [vmem:[%s37 + $0x2] sm:$0xff]
  %v271 = vld [vmem:[%s37 + $0xa] sm:$0xff]
  %v272 = vpack.c.bf16 %v270, %v270
  %v273 = vpack.c.bf16 %v271, %v271
  %276 = vrot.lane.b32.xlu0 %v272, 16
  %v277 = vpop.permute.xlu0 %276
  %278 = vrot.lane.b32.xlu0 %v273, 16
  %v279 = vpop.permute.xlu0 %278
  %282 = vst.msk [vmem:[#allocation3 + $0x8] sm:$0xf] %vm74, %v277
  %283 = vst.msk [vmem:[#allocation3 + $0xc] sm:$0xf] %vm74, %v279
  %v284 = vld [vmem:[#allocation3] sm:$0xf]
  %v285 = vld [vmem:[#allocation3 + $0x4] sm:$0xf]
  %v286 = vld [vmem:[#allocation3 + $0x8] sm:$0xf]
  %v287 = vld [vmem:[#allocation3 + $0xc] sm:$0xf]
  %s288 = scalar_lea.vmem %s1, 12
  %v289 = vld [vmem:[%s288] sm:$0xf]
  %v290 = vld [vmem:[%s288 + $0x4] sm:$0xf]
  %v291 = vld [vmem:[%s288 + $0x8] sm:$0xf]
  %s292 = scalar_lea.vmem %s2, 1
  %v293 = vld [vmem:[%s292] sm:$0x1]
  %v295 = vperm.slane %v293, 0
  %v301 = vunpack.c.l.b16 %v284
  %v302 = vunpack.c.l.b16 %v285
  %v303 = vunpack.c.l.b16 %v286
  %v304 = vunpack.c.l.b16 %v287
  %v305 = vpack.c.b16 %v302, %v301
  %v306 = vpack.c.b16 %v304, %v303
  %v310 = vunpack.c.l.b16 %v289
  %v311 = vunpack.c.l.b16 %v290
  %v312 = vunpack.c.l.b16 %v291
  %v313 = vpack.c.b16 %v311, %v310
  %v314 = vpack.c.b16 %v312, %v312
  %v317 = vsel %vm141, %v305, 0
  %v320 = vsel %vm141, %v306, 0
  %v323 = vsel %vm148, %v314, 0
  %325 = vmatpush.bf16.msra.mxu0 0
  %326 = vmatpush.bf16.msra.mxu0 0
  %327 = vmatpush.bf16.msra.mxu0 0
  %328 = vmatpush.bf16.msra.mxu0 0
  %329 = vmatpush.bf16.msra.mxu0 0
  %330 = vmatpush.bf16.msra.mxu0 0
  %331 = vmatpush.bf16.msra.mxu0 %v323
  %332 = vmatpush.bf16.msra.mxu0 %v313
  %333 = vmatmul.bf16.gmra.mxu0 %v317
  %v334 = vpop.f32.mrf.mxu0
  %v335 = vadd.f32 %v295, %v334
  %v336 = vpop.f32.mrf.mxu0
  %v337 = vadd.f32 %v295, %v336
  %338 = vmatmul.bf16.gmra.mxu0 %v320
  %v339 = vpop.f32.mrf.mxu0
  %v340 = vadd.f32 %v295, %v339
  %v341 = vpop.f32.mrf.mxu0
  %v342 = vadd.f32 %v295, %v341
  %343 = vdwg.mxu0
  %v344 = vmax.f32 %v335, 0.0
  %v345 = vmax.f32 %v337, 0.0
  %v346 = vmax.f32 %v340, 0.0
  %v347 = vmax.f32 %v342, 0.0
  %s348 = scalar_lea.vmem %s3, 1
  %v349 = vld [vmem:[%s348] sm:$0x1]
  %v351 = vperm.slane %v349, 0
  %v353 = vmul.f32 %v344, %v351
  %v354 = vmul.f32 %v345, %v351
  %v355 = vmul.f32 %v346, %v351
  %v356 = vmul.f32 %v347, %v351
  %s357 = scalar_lea.vmem %s4, 1
  %v358 = vld [vmem:[%s357] sm:$0x1]
  %v360 = vperm.slane %v358, 0
  %v362 = vadd.f32 %v353, %v360
  %v363 = vadd.f32 %v354, %v360
  %v364 = vadd.f32 %v355, %v360
  %v365 = vadd.f32 %v356, %v360
  %v366 = vpack.c.bf16 %v362, %v362
  %v367 = vpack.c.bf16 %v363, %v363
  %v368 = vpack.c.bf16 %v364, %v364
  %v369 = vpack.c.bf16 %v365, %v365
  %s370 = scalar_lea.vmem %s5, 16
  %371 = vst.msk [vmem:[%s370] sm:$0xf] %vm44, %v366
  %372 = vst.msk [vmem:[%s370 + $0x4] sm:$0xf] %vm44, %v367
  %373 = vst.msk [vmem:[%s370 + $0x8] sm:$0xf] %vm44, %v368
  %374 = vst.msk [vmem:[%s370 + $0xc] sm:$0xf] %vm44, %v369
  %s375 = scalar_lea.vmem %s0, 32
  %v376 = vld [vmem:[%s375] sm:$0xf]
  %v377 = vld [vmem:[%s375 + $0x4] sm:$0xf]
  %v378 = vld [vmem:[%s375 + $0x8] sm:$0xf]
  %v379 = vld [vmem:[%s375 + $0xc] sm:$0xf]
  %v380 = vunpack.c.l.bf16 %v376
  %v381 = vunpack.c.l.bf16 %v377
  %v382 = vunpack.c.l.bf16 %v378
  %v383 = vunpack.c.l.bf16 %v379
  %v384 = vadd.f32 %v380, %v362
  %v385 = vadd.f32 %v381, %v363
  %v386 = vadd.f32 %v382, %v364
  %v387 = vadd.f32 %v383, %v365
  %388 = vst.msk [vmem:[#allocation2 + $0x1] sm:$0xff] %vm34, %v384
  %389 = vst.msk [vmem:[#allocation2 + $0x9] sm:$0xff] %vm34, %v385
  %390 = vst.msk [vmem:[%s37 + $0x1] sm:$0xff] %vm34, %v386
  %391 = vst.msk [vmem:[%s37 + $0x9] sm:$0xff] %vm34, %v387
  %v392 = vld [vmem:[#allocation2] sm:$0xff]
  %v393 = vld [vmem:[#allocation2 + $0x8] sm:$0xff]
  %v394 = vpack.c.bf16 %v392, %v392
  %v395 = vpack.c.bf16 %v393, %v393
  %396 = vst.msk [vmem:[#allocation3] sm:$0xf] %vm44, %v394
  %397 = vst.msk [vmem:[#allocation3 + $0x4] sm:$0xf] %vm44, %v395
  %v398 = vld [vmem:[#allocation2 + $0x1] sm:$0xff]
  %v399 = vld [vmem:[#allocation2 + $0x9] sm:$0xff]
  %v400 = vpack.c.bf16 %v398, %v398
  %v401 = vpack.c.bf16 %v399, %v399
  %404 = vrot.lane.b32.xlu0 %v400, 8
  %v405 = vpop.permute.xlu0 %404
  %406 = vrot.lane.b32.xlu0 %v401, 8
  %v407 = vpop.permute.xlu0 %406
  %410 = vst.msk [vmem:[#allocation3] sm:$0xf] %vm59, %v405
  %411 = vst.msk [vmem:[#allocation3 + $0x4] sm:$0xf] %vm59, %v407
  %v412 = vld [vmem:[#allocation2 + $0x2] sm:$0xff]
  %v413 = vld [vmem:[#allocation2 + $0xa] sm:$0xff]
  %v414 = vpack.c.bf16 %v412, %v412
  %v415 = vpack.c.bf16 %v413, %v413
  %418 = vrot.lane.b32.xlu0 %v414, 16
  %v419 = vpop.permute.xlu0 %418
  %420 = vrot.lane.b32.xlu0 %v415, 16
  %v421 = vpop.permute.xlu0 %420
  %424 = vst.msk [vmem:[#allocation3] sm:$0xf] %vm74, %v419
  %425 = vst.msk [vmem:[#allocation3 + $0x4] sm:$0xf] %vm74, %v421
  %v426 = vld [vmem:[%s37] sm:$0xff]
  %v427 = vld [vmem:[%s37 + $0x8] sm:$0xff]
  %v428 = vpack.c.bf16 %v426, %v426
  %v429 = vpack.c.bf16 %v427, %v427
  %430 = vst.msk [vmem:[#allocation3 + $0x8] sm:$0xf] %vm44, %v428
  %431 = vst.msk [vmem:[#allocation3 + $0xc] sm:$0xf] %vm44, %v429
  %v432 = vld [vmem:[%s37 + $0x1] sm:$0xff]
  %v433 = vld [vmem:[%s37 + $0x9] sm:$0xff]
  %v434 = vpack.c.bf16 %v432, %v432
  %v435 = vpack.c.bf16 %v433, %v433
  %438 = vrot.lane.b32.xlu0 %v434, 8
  %v439 = vpop.permute.xlu0 %438
  %440 = vrot.lane.b32.xlu0 %v435, 8
  %v441 = vpop.permute.xlu0 %440
  %444 = vst.msk [vmem:[#allocation3 + $0x8] sm:$0xf] %vm59, %v439
  %445 = vst.msk [vmem:[#allocation3 + $0xc] sm:$0xf] %vm59, %v441
  %v446 = vld [vmem:[%s37 + $0x2] sm:$0xff]
  %v447 = vld [vmem:[%s37 + $0xa] sm:$0xff]
  %v448 = vpack.c.bf16 %v446, %v446
  %v449 = vpack.c.bf16 %v447, %v447
  %452 = vrot.lane.b32.xlu0 %v448, 16
  %v453 = vpop.permute.xlu0 %452
  %454 = vrot.lane.b32.xlu0 %v449, 16
  %v455 = vpop.permute.xlu0 %454
  %458 = vst.msk [vmem:[#allocation3 + $0x8] sm:$0xf] %vm74, %v453
  %459 = vst.msk [vmem:[#allocation3 + $0xc] sm:$0xf] %vm74, %v455
  %v460 = vld [vmem:[#allocation3] sm:$0xf]
  %v461 = vld [vmem:[#allocation3 + $0x4] sm:$0xf]
  %v462 = vld [vmem:[#allocation3 + $0x8] sm:$0xf]
  %v463 = vld [vmem:[#allocation3 + $0xc] sm:$0xf]
  %s464 = scalar_lea.vmem %s1, 24
  %v465 = vld [vmem:[%s464] sm:$0xf]
  %v466 = vld [vmem:[%s464 + $0x4] sm:$0xf]
  %v467 = vld [vmem:[%s464 + $0x8] sm:$0xf]
  %s468 = scalar_lea.vmem %s2, 2
  %v469 = vld [vmem:[%s468] sm:$0x1]
  %v471 = vperm.slane %v469, 0
  %v477 = vunpack.c.l.b16 %v460
  %v478 = vunpack.c.l.b16 %v461
  %v479 = vunpack.c.l.b16 %v462
  %v480 = vunpack.c.l.b16 %v463
  %v481 = vpack.c.b16 %v478, %v477
  %v482 = vpack.c.b16 %v480, %v479
  %v486 = vunpack.c.l.b16 %v465
  %v487 = vunpack.c.l.b16 %v466
  %v488 = vunpack.c.l.b16 %v467
  %v489 = vpack.c.b16 %v487, %v486
  %v490 = vpack.c.b16 %v488, %v488
  %v493 = vsel %vm141, %v481, 0
  %v496 = vsel %vm141, %v482, 0
  %v499 = vsel %vm148, %v490, 0
  %501 = vmatpush.bf16.msra.mxu0 0
  %502 = vmatpush.bf16.msra.mxu0 0
  %503 = vmatpush.bf16.msra.mxu0 0
  %504 = vmatpush.bf16.msra.mxu0 0
  %505 = vmatpush.bf16.msra.mxu0 0
  %506 = vmatpush.bf16.msra.mxu0 0
  %507 = vmatpush.bf16.msra.mxu0 %v499
  %508 = vmatpush.bf16.msra.mxu0 %v489
  %509 = vmatmul.bf16.gmra.mxu0 %v493
  %v510 = vpop.f32.mrf.mxu0
  %v511 = vadd.f32 %v471, %v510
  %v512 = vpop.f32.mrf.mxu0
  %v513 = vadd.f32 %v471, %v512
  %514 = vmatmul.bf16.gmra.mxu0 %v496
  %v515 = vpop.f32.mrf.mxu0
  %v516 = vadd.f32 %v471, %v515
  %v517 = vpop.f32.mrf.mxu0
  %v518 = vadd.f32 %v471, %v517
  %519 = vdwg.mxu0
  %v520 = vmax.f32 %v511, 0.0
  %v521 = vmax.f32 %v513, 0.0
  %v522 = vmax.f32 %v516, 0.0
  %v523 = vmax.f32 %v518, 0.0
  %s524 = scalar_lea.vmem %s3, 2
  %v525 = vld [vmem:[%s524] sm:$0x1]
  %v527 = vperm.slane %v525, 0
  %v529 = vmul.f32 %v520, %v527
  %v530 = vmul.f32 %v521, %v527
  %v531 = vmul.f32 %v522, %v527
  %v532 = vmul.f32 %v523, %v527
  %s533 = scalar_lea.vmem %s4, 2
  %v534 = vld [vmem:[%s533] sm:$0x1]
  %v536 = vperm.slane %v534, 0
  %v538 = vadd.f32 %v529, %v536
  %v539 = vadd.f32 %v530, %v536
  %v540 = vadd.f32 %v531, %v536
  %v541 = vadd.f32 %v532, %v536
  %v542 = vpack.c.bf16 %v538, %v538
  %v543 = vpack.c.bf16 %v539, %v539
  %v544 = vpack.c.bf16 %v540, %v540
  %v545 = vpack.c.bf16 %v541, %v541
  %s546 = scalar_lea.vmem %s5, 32
  %547 = vst.msk [vmem:[%s546] sm:$0xf] %vm44, %v542
  %548 = vst.msk [vmem:[%s546 + $0x4] sm:$0xf] %vm44, %v543
  %549 = vst.msk [vmem:[%s546 + $0x8] sm:$0xf] %vm44, %v544
  %550 = vst.msk [vmem:[%s546 + $0xc] sm:$0xf] %vm44, %v545
  // Predicated region
  $region22: #{tpu_custom_call.1} parent=0 // pred_check
    _
  $region23: #{tpu_custom_call.1} parent=0 // pred_check_branch
    %552 = sbr.rel (0) target = $region25
  $region24: #{tpu_custom_call.1} parent=0 // pred_region
    _
  $region25: #{tpu_custom_call.1} parent=0 // pred_fallthru
    _
  // Predicated region
  $region26: #{tpu_custom_call.1} parent=0 // pred_check
    _
  $region27: #{tpu_custom_call.1} parent=0 // pred_check_branch
    %554 = sbr.rel (0) target = $region29
  $region28: #{tpu_custom_call.1} parent=0 // pred_region
    _
  $region29: #{tpu_custom_call.1} parent=0 // pred_fallthru
    _

</llo_original>
